<compile_context>
chip_gen: v7x
topology: tpu7x:2x2x1
jax: 0.10.0
libtpu: 0.0.40
codegen_flags: <defaults>
</compile_context>

<pallas_src>
import functools

import jax
import jax.numpy as jnp
from jax.experimental import pallas as pl
from jax.experimental.pallas import tpu as pltpu


def _round_up(x, m):
    return (x + m - 1) // m * m


def _readout_kernel(n_mlp, num_nodes, tile_n, tiles_per_split, mask_needed, *refs):
    """refs = (x_ref, w0, b0, ..., w_out, b_out, out_ref, acc_ref)."""
    x_ref = refs[0]
    out_ref = refs[-2]
    acc_ref = refs[-1]
    params = refs[1:-2]

    s = pl.program_id(0)          # split axis ("parallel": one per TC on v7x)
    i = pl.program_id(1)          # node-tile axis within the split (reduction)

    @pl.when(i == 0)
    def _init():
        acc_ref[...] = jnp.zeros_like(acc_ref)

    # MLP (Linear + ReLU) on this node tile.  MXU inputs are bf16; bias-add,
    # ReLU and accumulation stay in f32 on the VPU.
    h = x_ref[...].astype(jnp.bfloat16)            # (tile_n, E) bf16
    h_f32 = h.astype(jnp.float32)
    for l in range(n_mlp):
        w = params[2 * l][...]                     # bf16 (d_in, d_out_pad)
        b = params[2 * l + 1][...]                 # f32  (1, d_out_pad)
        h_f32 = jnp.maximum(
            jnp.dot(h, w, preferred_element_type=jnp.float32) + b, 0.0)
        h = h_f32.astype(jnp.bfloat16)

    def _accumulate(vals):
        acc_ref[...] += jnp.sum(vals, axis=0, keepdims=True)

    if mask_needed:
        # Only ragged / overshoot blocks pay for the row mask; interior tiles
        # take the plain-add branch.
        g = s * tiles_per_split + i                # global (unclamped) tile index
        row_start = g * tile_n

        @pl.when(row_start + tile_n <= num_nodes)
        def _full():
            _accumulate(h_f32)

        @pl.when(row_start + tile_n > num_nodes)
        def _partial():
            row = row_start + jax.lax.broadcasted_iota(jnp.int32, h_f32.shape, 0)
            # jnp.where (not multiply) so garbage/NaN in OOB rows never leaks.
            _accumulate(jnp.where(row < num_nodes, h_f32, 0.0))
    else:
        _accumulate(h_f32)

    @pl.when(i == pl.num_programs(1) - 1)
    def _finalize():
        # mean is hoisted before the output Linear:
        #   mean(h @ W + b, 0) == mean(h, 0) @ W + b       (exact identity)
        # each split contributes (partial_sum/num_nodes) @ W + b/num_splits.
        mean_h = acc_ref[...] * (1.0 / num_nodes)          # f32 (1, O_pad)
        w_out = params[2 * n_mlp][...]                     # bf16 (O_pad, C_pad)
        b_out = params[2 * n_mlp + 1][...]                 # f32  (1, C_pad), pre-scaled
        out_ref[0] = (
            jnp.dot(mean_h.astype(jnp.bfloat16), w_out,
                    preferred_element_type=jnp.float32) + b_out)


def readout_forward(x, mlp_params, out_w, out_b, *, tile_n=2048, num_splits=None):
    """x: [num_nodes, E]; mlp_params: list of (W [in,out], b [out]); returns [num_cats]."""
    LANE = 128
    num_nodes, E = x.shape
    num_cats = out_w.shape[1]
    n_mlp = len(mlp_params)

    # ---- feature dims: x keeps its true width E; weight OUTPUT dims pad to 128 ----
    dims = [E] + [w.shape[1] for (w, _) in mlp_params]
    dims_pad = [E] + [_round_up(d, LANE) for d in dims[1:]]
    O_pad = dims_pad[-1]
    C_pad = _round_up(num_cats, LANE)

    # ---- node tiling: big tiles, multiple of 16(>=8), never larger than needed ----
    tile_cap = max(8, ((24 << 20) // (8 * max(E, 1))) // 8 * 8)
    tile_n = max(8, min(_round_up(tile_n, 16), _round_up(num_nodes, 8), tile_cap))
    tiles_total = pl.cdiv(num_nodes, tile_n)

    if num_splits is None:
        num_splits = 2 if tiles_total >= 2 else 1   # use both TCs on v7x
    num_splits = max(1, min(num_splits, tiles_total))
    tiles_per_split = pl.cdiv(tiles_total, num_splits)
    mask_needed = num_splits * tiles_per_split * tile_n > num_nodes
    last_block = tiles_total - 1

    def x_index_map(s, i):
        # clamp overshoot blocks (when splits don't divide evenly) to a valid
        # block start; their rows are fully masked inside the kernel.
        return (jnp.minimum(s * tiles_per_split + i, last_block), 0)

    def pad2(a, r, c, dtype):
        a = a if a.ndim == 2 else a.reshape(1, -1)
        return jnp.pad(a, ((0, r - a.shape[0]), (0, c - a.shape[1]))).astype(dtype)

    flat = []
    specs = [pl.BlockSpec((tile_n, E), x_index_map)]
    for li, (w, b) in enumerate(mlp_params):
        d_in, d_out = dims_pad[li], dims_pad[li + 1]
        flat += [pad2(w, d_in, d_out, jnp.bfloat16), pad2(b, 1, d_out, jnp.float32)]
        specs += [pl.BlockSpec((d_in, d_out), lambda s, i: (0, 0)),
                  pl.BlockSpec((1, d_out), lambda s, i: (0, 0))]
    # output-layer bias pre-scaled by 1/num_splits so the per-split partial
    # logits sum exactly to  mean_h @ W_out + b_out.
    flat += [pad2(out_w, O_pad, C_pad, jnp.bfloat16),
             pad2(out_b / num_splits, 1, C_pad, jnp.float32)]
    specs += [pl.BlockSpec((O_pad, C_pad), lambda s, i: (0, 0)),
              pl.BlockSpec((1, C_pad), lambda s, i: (0, 0))]

    # ---- tight single-hedge VMEM budget (capped at 48 MiB for v7x headroom) ----
    vmem_bytes = 2 * tile_n * E * x.dtype.itemsize            # double-buffered x tile
    for a in flat:
        vmem_bytes += 2 * a.size * a.dtype.itemsize           # params (2 buffers each)
    vmem_bytes += 2 * C_pad * 4 + O_pad * 4                   # output block + accumulator
    vmem_bytes += (n_mlp + 2) * tile_n * max(dims_pad[1:] + [C_pad]) * 4  # live activations
    vmem_limit = int(min(max(vmem_bytes + (4 << 20), 16 << 20), 48 << 20))

    kernel = functools.partial(_readout_kernel, n_mlp, num_nodes, tile_n,
                               tiles_per_split, mask_needed)

    out = pl.pallas_call(
        kernel,
        out_shape=jax.ShapeDtypeStruct((num_splits, 1, C_pad), jnp.float32),
        grid_spec=pltpu.PrefetchScalarGridSpec(
            num_scalar_prefetch=0,
            grid=(num_splits, tiles_per_split),
            in_specs=specs,
            out_specs=pl.BlockSpec((1, 1, C_pad), lambda s, i: (s, 0, 0)),
            scratch_shapes=[pltpu.VMEM((1, O_pad), jnp.float32)]),
        compiler_params=pltpu.CompilerParams(
            dimension_semantics=("parallel", "arbitrary"),   # node axis is a reduction
            vmem_limit_bytes=vmem_limit),
    )(x, *flat)
    # combine the (tiny) per-split partial logits: [num_splits, 1, C_pad] -> [num_cats]
    return jnp.sum(out[:, 0, :], axis=0)[:num_cats]


# ----------------------------- test helpers ---------------------------------

def _init_linear(key, fan_in, fan_out):
    """Deterministic stand-in for nn.Linear default init (uniform +/- 1/sqrt(fan_in))."""
    kw, kb = jax.random.split(key)
    bound = 1.0 / jnp.sqrt(jnp.float32(fan_in))
    w = jax.random.uniform(kw, (fan_in, fan_out), jnp.float32, -bound, bound)
    b = jax.random.uniform(kb, (fan_out,), jnp.float32, -bound, bound)
    return w, b


def _reference_f32(x, mlp_params, out_w, out_b):
    """Pure f32 reference == the PyTorch module's math."""
    h = x.astype(jnp.float32)
    for (w, b) in mlp_params:
        h = jnp.maximum(h @ w + b.reshape(1, -1), 0.0)
    logits = h @ out_w + out_b.reshape(1, -1)
    return jnp.mean(logits, axis=0)


def _reference_bf16(x, mlp_params, out_w, out_b):
    """Reference mimicking the kernel's bf16 MXU inputs with f32 accumulation."""
    def bdot(a, w):
        return jnp.dot(a.astype(jnp.bfloat16).astype(jnp.float32),
                       w.astype(jnp.bfloat16).astype(jnp.float32),
                       preferred_element_type=jnp.float32)
    h = x.astype(jnp.float32)
    for (w, b) in mlp_params:
        h = jnp.maximum(bdot(h, w) + b.reshape(1, -1), 0.0)
    rep = jnp.mean(h, axis=0, keepdims=True)          # mean hoisted (exact identity)
    return (bdot(rep, out_w) + out_b.reshape(1, -1))[0]


if __name__ == "__main__":
    embedding_dim = 32
    hidden_dim = 32
    output_dim = 32
    num_cats = 4
    n_layers = 3   # -> Linear(E,H), Linear(H,H), Linear(H,O) in self.layers

    root = jax.random.PRNGKey(0)
    k_x1, k_x2, k_x3, k_p = jax.random.split(root, 4)

    # Build MLP parameters exactly as Readout.__init__ does.
    dims = [embedding_dim, hidden_dim]
    for _ in range(n_layers - 2):
        dims.append(hidden_dim)
    dims.append(output_dim)

    keys = jax.random.split(k_p, len(dims))
    mlp_params = [_init_linear(keys[i], dims[i], dims[i + 1]) for i in range(len(dims) - 1)]
    out_w, out_b = _init_linear(keys[-1], output_dim, num_cats)

    def check(r, x):
        assert r.shape == (num_cats,)
        assert jnp.allclose(r, _reference_bf16(x, mlp_params, out_w, out_b),
                            atol=5e-3, rtol=5e-3)
        assert jnp.allclose(r, _reference_f32(x, mlp_params, out_w, out_b),
                            atol=5e-2, rtol=5e-2)

    # --- test 1: tiny graph; single exact tile, single split ---
    x1 = jax.random.normal(k_x1, (8, embedding_dim), jnp.float32)
    r1 = readout_forward(x1, mlp_params, out_w, out_b)
    jax.block_until_ready(r1)
    check(r1, x1)

    # --- test 2: 50 nodes / tile 16 -> 4 tiles, 2 splits, ragged last block ---
    x2 = jax.random.normal(k_x2, (50, embedding_dim), jnp.float32)
    r2 = readout_forward(x2, mlp_params, out_w, out_b, tile_n=16)
    jax.block_until_ready(r2)
    check(r2, x2)

    # --- test 3: 37 nodes / tile 16 -> 3 tiles, 2 splits (uneven: exercises the
    #     clamped + fully-masked overshoot block) ---
    x3 = jax.random.normal(k_x3, (37, embedding_dim), jnp.float32)
    r3 = readout_forward(x3, mlp_params, out_w, out_b, tile_n=16)
    jax.block_until_ready(r3)
    check(r3, x3)

    print("KERNEL_OK")
</pallas_src>

<mosaic_0001>
module attributes {stable_mosaic.version = 11 : i64} {
  func.func @_readout_kernel(%arg0: i32, %arg1: i32, %arg2: memref<8x32xf32, #tpu.memory_space<vmem>>, %arg3: memref<32x128xbf16, #tpu.memory_space<vmem>>, %arg4: memref<1x128xf32, #tpu.memory_space<vmem>>, %arg5: memref<128x128xbf16, #tpu.memory_space<vmem>>, %arg6: memref<1x128xf32, #tpu.memory_space<vmem>>, %arg7: memref<128x128xbf16, #tpu.memory_space<vmem>>, %arg8: memref<1x128xf32, #tpu.memory_space<vmem>>, %arg9: memref<128x128xbf16, #tpu.memory_space<vmem>>, %arg10: memref<1x128xf32, #tpu.memory_space<vmem>>, %arg11: memref<1x1x128xf32, #tpu.memory_space<vmem>>, %arg12: memref<1x128xf32, #tpu.memory_space<vmem>>) attributes {dimension_semantics = [#tpu.dimension_semantics<parallel>, #tpu.dimension_semantics<arbitrary>], iteration_bounds = array<i64: 1, 1>, scalar_prefetch = 0 : i64, scratch_operands = 1 : i64, tpu.core_type = #tpu.core_type<tc>, window_params = [{transform_indices = @transform_0, window_bounds = array<i64: 8, 32>}, {pipeline_mode = #tpu.pipeline_mode<synchronous>, transform_indices = @transform_1, window_bounds = array<i64: 32, 128>}, {pipeline_mode = #tpu.pipeline_mode<synchronous>, transform_indices = @transform_2, window_bounds = array<i64: 1, 128>}, {pipeline_mode = #tpu.pipeline_mode<synchronous>, transform_indices = @transform_3, window_bounds = array<i64: 128, 128>}, {pipeline_mode = #tpu.pipeline_mode<synchronous>, transform_indices = @transform_4, window_bounds = array<i64: 1, 128>}, {pipeline_mode = #tpu.pipeline_mode<synchronous>, transform_indices = @transform_5, window_bounds = array<i64: 128, 128>}, {pipeline_mode = #tpu.pipeline_mode<synchronous>, transform_indices = @transform_6, window_bounds = array<i64: 1, 128>}, {pipeline_mode = #tpu.pipeline_mode<synchronous>, transform_indices = @transform_7, window_bounds = array<i64: 128, 128>}, {pipeline_mode = #tpu.pipeline_mode<synchronous>, transform_indices = @transform_8, window_bounds = array<i64: 1, 128>}, {transform_indices = @transform_9, window_bounds = array<i64: 1, 1, 128>}]} {
    %c0_i32 = arith.constant 0 : i32
    %0 = arith.cmpi eq, %arg1, %c0_i32 : i32
    %1 = arith.extui %0 : i1 to i32
    %c0_i32_0 = arith.constant 0 : i32
    %2 = arith.cmpi ne, %1, %c0_i32_0 : i32
    scf.if %2 {
      %cst_26 = arith.constant 0.000000e+00 : f32
      %36 = vector.broadcast %cst_26 : f32 to vector<1x128xf32>
      %c0_27 = arith.constant 0 : index
      %c0_28 = arith.constant 0 : index
      %37 = vector.load %arg12[%c0_27, %c0_28] : memref<1x128xf32, #tpu.memory_space<vmem>>, vector<1x128xf32>
      tpu.vector_store %arg12[%c0_27, %c0_28], %36 {strides = array<i32>} : memref<1x128xf32, #tpu.memory_space<vmem>>, vector<1x128xf32>,
    } else {
    }
    %c0 = arith.constant 0 : index
    %c0_1 = arith.constant 0 : index
    %3 = vector.load %arg2[%c0, %c0_1] : memref<8x32xf32, #tpu.memory_space<vmem>>, vector<8x32xf32>
    %4 = arith.truncf %3 : vector<8x32xf32> to vector<8x32xbf16>
    %c0_2 = arith.constant 0 : index
    %c0_3 = arith.constant 0 : index
    %5 = vector.load %arg3[%c0_2, %c0_3] : memref<32x128xbf16, #tpu.memory_space<vmem>>, vector<32x128xbf16>
    %c0_4 = arith.constant 0 : index
    %c0_5 = arith.constant 0 : index
    %6 = vector.load %arg4[%c0_4, %c0_5] : memref<1x128xf32, #tpu.memory_space<vmem>>, vector<1x128xf32>
    %cst = arith.constant dense<0.000000e+00> : vector<8x128xf32>
    %7 = tpu.matmul %4, %5, %cst {dimension_numbers = #tpu.dot_dimension_numbers<[1], [0], [0], [1], [0, 0, 1, 1], [], []>} : vector<8x32xbf16>, vector<32x128xbf16>, vector<8x128xf32> -> vector<8x128xf32>
    %8 = vector.broadcast %6 : vector<1x128xf32> to vector<8x128xf32>
    %9 = arith.addf %7, %8 : vector<8x128xf32>
    %cst_6 = arith.constant 0.000000e+00 : f32
    %10 = vector.broadcast %cst_6 : f32 to vector<8x128xf32>
    %11 = arith.maximumf %9, %10 : vector<8x128xf32>
    %12 = arith.truncf %11 : vector<8x128xf32> to vector<8x128xbf16>
    %c0_7 = arith.constant 0 : index
    %c0_8 = arith.constant 0 : index
    %13 = vector.load %arg5[%c0_7, %c0_8] : memref<128x128xbf16, #tpu.memory_space<vmem>>, vector<128x128xbf16>
    %c0_9 = arith.constant 0 : index
    %c0_10 = arith.constant 0 : index
    %14 = vector.load %arg6[%c0_9, %c0_10] : memref<1x128xf32, #tpu.memory_space<vmem>>, vector<1x128xf32>
    %cst_11 = arith.constant dense<0.000000e+00> : vector<8x128xf32>
    %15 = tpu.matmul %12, %13, %cst_11 {dimension_numbers = #tpu.dot_dimension_numbers<[1], [0], [0], [1], [0, 0, 1, 1], [], []>} : vector<8x128xbf16>, vector<128x128xbf16>, vector<8x128xf32> -> vector<8x128xf32>
    %16 = vector.broadcast %14 : vector<1x128xf32> to vector<8x128xf32>
    %17 = arith.addf %15, %16 : vector<8x128xf32>
    %cst_12 = arith.constant 0.000000e+00 : f32
    %18 = vector.broadcast %cst_12 : f32 to vector<8x128xf32>
    %19 = arith.maximumf %17, %18 : vector<8x128xf32>
    %20 = arith.truncf %19 : vector<8x128xf32> to vector<8x128xbf16>
    %c0_13 = arith.constant 0 : index
    %c0_14 = arith.constant 0 : index
    %21 = vector.load %arg7[%c0_13, %c0_14] : memref<128x128xbf16, #tpu.memory_space<vmem>>, vector<128x128xbf16>
    %c0_15 = arith.constant 0 : index
    %c0_16 = arith.constant 0 : index
    %22 = vector.load %arg8[%c0_15, %c0_16] : memref<1x128xf32, #tpu.memory_space<vmem>>, vector<1x128xf32>
    %cst_17 = arith.constant dense<0.000000e+00> : vector<8x128xf32>
    %23 = tpu.matmul %20, %21, %cst_17 {dimension_numbers = #tpu.dot_dimension_numbers<[1], [0], [0], [1], [0, 0, 1, 1], [], []>} : vector<8x128xbf16>, vector<128x128xbf16>, vector<8x128xf32> -> vector<8x128xf32>
    %24 = vector.broadcast %22 : vector<1x128xf32> to vector<8x128xf32>
    %25 = arith.addf %23, %24 : vector<8x128xf32>
    %cst_18 = arith.constant 0.000000e+00 : f32
    %26 = vector.broadcast %cst_18 : f32 to vector<8x128xf32>
    %27 = arith.maximumf %25, %26 : vector<8x128xf32>
    %c0_19 = arith.constant 0 : index
    %c0_20 = arith.constant 0 : index
    %28 = vector.load %arg12[%c0_19, %c0_20] : memref<1x128xf32, #tpu.memory_space<vmem>>, vector<1x128xf32>
    %cst_21 = arith.constant dense<0.000000e+00> : vector<128xf32>
    %29 = vector.multi_reduction <add>, %27, %cst_21 [0] : vector<8x128xf32> to vector<128xf32>
    %30 = vector.shape_cast %29 : vector<128xf32> to vector<1x128xf32>
    %31 = arith.addf %28, %30 : vector<1x128xf32>
    %c0_22 = arith.constant 0 : index
    %c0_23 = arith.constant 0 : index
    %32 = vector.load %arg12[%c0_22, %c0_23] : memref<1x128xf32, #tpu.memory_space<vmem>>, vector<1x128xf32>
    tpu.vector_store %arg12[%c0_22, %c0_23], %31 {strides = array<i32>} : memref<1x128xf32, #tpu.memory_space<vmem>>, vector<1x128xf32>,
    %c0_i32_24 = arith.constant 0 : i32
    %33 = arith.cmpi eq, %arg1, %c0_i32_24 : i32
    %34 = arith.extui %33 : i1 to i32
    %c0_i32_25 = arith.constant 0 : i32
    %35 = arith.cmpi ne, %34, %c0_i32_25 : i32
    scf.if %35 {
      %c0_26 = arith.constant 0 : index
      %c0_27 = arith.constant 0 : index
      %36 = vector.load %arg12[%c0_26, %c0_27] : memref<1x128xf32, #tpu.memory_space<vmem>>, vector<1x128xf32>
      %cst_28 = arith.constant 1.250000e-01 : f32
      %37 = vector.broadcast %cst_28 : f32 to vector<1x128xf32>
      %38 = arith.mulf %36, %37 : vector<1x128xf32>
      %c0_29 = arith.constant 0 : index
      %c0_30 = arith.constant 0 : index
      %39 = vector.load %arg9[%c0_29, %c0_30] : memref<128x128xbf16, #tpu.memory_space<vmem>>, vector<128x128xbf16>
      %c0_31 = arith.constant 0 : index
      %c0_32 = arith.constant 0 : index
      %40 = vector.load %arg10[%c0_31, %c0_32] : memref<1x128xf32, #tpu.memory_space<vmem>>, vector<1x128xf32>
      %41 = arith.truncf %38 : vector<1x128xf32> to vector<1x128xbf16>
      %cst_33 = arith.constant dense<0.000000e+00> : vector<1x128xf32>
      %42 = tpu.matmul %41, %39, %cst_33 {dimension_numbers = #tpu.dot_dimension_numbers<[1], [0], [0], [1], [0, 0, 1, 1], [], []>} : vector<1x128xbf16>, vector<128x128xbf16>, vector<1x128xf32> -> vector<1x128xf32>
      %43 = arith.addf %42, %40 : vector<1x128xf32>
      %c0_34 = arith.constant 0 : index
      %c0_35 = arith.constant 0 : index
      %c0_36 = arith.constant 0 : index
      %44 = vector.load %arg11[%c0_34, %c0_35, %c0_36] : memref<1x1x128xf32, #tpu.memory_space<vmem>>, vector<1x1x128xf32>
      %45 = vector.shape_cast %44 : vector<1x1x128xf32> to vector<1x128xf32>
      %46 = vector.shape_cast %43 : vector<1x128xf32> to vector<1x1x128xf32>
      tpu.vector_store %arg11[%c0_34, %c0_35, %c0_36], %46 {strides = array<i32>} : memref<1x1x128xf32, #tpu.memory_space<vmem>>, vector<1x1x128xf32>,
    } else {
    }
    return
  }
  func.func @transform_0(%arg0: i32, %arg1: i32) -> (i32, i32) {
    %c1_i32 = arith.constant 1 : i32
    %0 = arith.muli %arg0, %c1_i32 : i32
    %1 = arith.addi %0, %arg1 : i32
    %c0_i32 = arith.constant 0 : i32
    %2 = arith.minsi %1, %c0_i32 : i32
    %c0_i32_0 = arith.constant 0 : i32
    %c0_i32_1 = arith.constant 0 : i32
    return %2, %c0_i32_0 : i32, i32
  }
  func.func @transform_1(%arg0: i32, %arg1: i32) -> (i32, i32) {
    %c0_i32 = arith.constant 0 : i32
    %c0_i32_0 = arith.constant 0 : i32
    %c0_i32_1 = arith.constant 0 : i32
    return %c0_i32, %c0_i32_0 : i32, i32
  }
  func.func @transform_2(%arg0: i32, %arg1: i32) -> (i32, i32) {
    %c0_i32 = arith.constant 0 : i32
    %c0_i32_0 = arith.constant 0 : i32
    %c0_i32_1 = arith.constant 0 : i32
    return %c0_i32, %c0_i32_0 : i32, i32
  }
  func.func @transform_3(%arg0: i32, %arg1: i32) -> (i32, i32) {
    %c0_i32 = arith.constant 0 : i32
    %c0_i32_0 = arith.constant 0 : i32
    %c0_i32_1 = arith.constant 0 : i32
    return %c0_i32, %c0_i32_0 : i32, i32
  }
  func.func @transform_4(%arg0: i32, %arg1: i32) -> (i32, i32) {
    %c0_i32 = arith.constant 0 : i32
    %c0_i32_0 = arith.constant 0 : i32
    %c0_i32_1 = arith.constant 0 : i32
    return %c0_i32, %c0_i32_0 : i32, i32
  }
  func.func @transform_5(%arg0: i32, %arg1: i32) -> (i32, i32) {
    %c0_i32 = arith.constant 0 : i32
    %c0_i32_0 = arith.constant 0 : i32
    %c0_i32_1 = arith.constant 0 : i32
    return %c0_i32, %c0_i32_0 : i32, i32
  }
  func.func @transform_6(%arg0: i32, %arg1: i32) -> (i32, i32) {
    %c0_i32 = arith.constant 0 : i32
    %c0_i32_0 = arith.constant 0 : i32
    %c0_i32_1 = arith.constant 0 : i32
    return %c0_i32, %c0_i32_0 : i32, i32
  }
  func.func @transform_7(%arg0: i32, %arg1: i32) -> (i32, i32) {
    %c0_i32 = arith.constant 0 : i32
    %c0_i32_0 = arith.constant 0 : i32
    %c0_i32_1 = arith.constant 0 : i32
    return %c0_i32, %c0_i32_0 : i32, i32
  }
  func.func @transform_8(%arg0: i32, %arg1: i32) -> (i32, i32) {
    %c0_i32 = arith.constant 0 : i32
    %c0_i32_0 = arith.constant 0 : i32
    %c0_i32_1 = arith.constant 0 : i32
    return %c0_i32, %c0_i32_0 : i32, i32
  }
  func.func @transform_9(%arg0: i32, %arg1: i32) -> (i32, i32, i32) {
    %c0_i32 = arith.constant 0 : i32
    %c0_i32_0 = arith.constant 0 : i32
    %c0_i32_1 = arith.constant 0 : i32
    return %arg0, %c0_i32, %c0_i32_0 : i32, i32, i32
  }
}

</mosaic_0001>

<llo_original>
// kernel: tpu_custom_call.1
$region0: #{tpu_custom_call.1}
  #allocation0 [shape = 'u32[]', space=smem, size = 0x4, offset = 0x4, fixed_abs, tag = 'smem constant byte address 0x4 - core index']
  #allocation1 [shape = 'u32[144,128]{1,0:T(1,128)}', space=vmem, size = 0x12000, scoped, tag = 'internal scratch']
  #allocation2 [shape = 'f32[1,128]{1,0:T(1,128)}', space=vmem, size = 0x200, scoped, tag = 'scratch operand']
  %s0 = inlined_call_operand.hbm [shape: f32[8,32], index: 0, kind: input, shape index: {}]
  %s1 = inlined_call_operand.hbm [shape: bf16[32,128], index: 1, kind: input, shape index: {}]
  %s2 = inlined_call_operand.vmem [shape: f32[1,128], index: 2, kind: input, shape index: {}]
  %s3 = inlined_call_operand.hbm [shape: bf16[128,128], index: 3, kind: input, shape index: {}]
  %s4 = inlined_call_operand.vmem [shape: f32[1,128], index: 4, kind: input, shape index: {}]
  %s5 = inlined_call_operand.hbm [shape: bf16[128,128], index: 5, kind: input, shape index: {}]
  %s6 = inlined_call_operand.vmem [shape: f32[1,128], index: 6, kind: input, shape index: {}]
  %s7 = inlined_call_operand.hbm [shape: bf16[128,128], index: 7, kind: input, shape index: {}]
  %s8 = inlined_call_operand.vmem [shape: f32[1,128], index: 8, kind: input, shape index: {}]
  %s9 = inlined_call_operand.hbm [shape: f32[1,1,128], index: 9, kind: output, shape index: {}]
  %s10 = sld [smem:[#allocation0]]
  $region74: #{tpu_custom_call.1} parent=0
    _
  %s12 = ssub.s32 1, %s10
  %s13 = scalar_select 0, %s12, %s10
  $region1: #{tpu_custom_call.1} parent=0
    #allocation3 [shape = 'u8[4096]{0}', space=vmem, size = 0x1000, scoped, tag = 'input window, operand 0, single buffered']
    #allocation4 [shape = 's32[1]{0}', space=sflag, size = 0x4, scoped, tag = 'scoped memory for tpu_custom_call.1']
    #allocation5 [shape = 's32[1]{0}', space=sflag, size = 0x4, scoped, tag = 'scoped memory for tpu_custom_call.1']
    #allocation6 [shape = 'u8[8192]{0}', space=vmem, size = 0x2000, scoped, tag = 'input window, operand 1, single buffered']
    #allocation7 [shape = 's32[1]{0}', space=sflag, size = 0x4, scoped, tag = 'scoped memory for tpu_custom_call.1']
    #allocation8 [shape = 'u8[32768]{0}', space=vmem, size = 0x8000, scoped, tag = 'input window, operand 3, single buffered']
    #allocation9 [shape = 'u8[32768]{0}', space=vmem, size = 0x8000, scoped, tag = 'input window, operand 5, single buffered']
    #allocation10 [shape = 's32[1]{0}', space=sflag, size = 0x4, scoped, tag = 'scoped memory for tpu_custom_call.1']
    #allocation11 [shape = 'u8[32768]{0}', space=vmem, size = 0x8000, scoped, tag = 'input window, operand 7, single buffered']
    #allocation12 [shape = 'u8[512]{0}', space=vmem, size = 0x400, scoped, tag = 'output window, operand 0, single buffered']
    %14 = vsyncpa [#allocation4], 0
    %15 = vsyncpa [#allocation7], 0
    %16 = vsyncpa [#allocation10], 0
    %17 = vsyncpa [#allocation5], 0
    // Predicated region
    $region2: #{tpu_custom_call.1} parent=1 // pred_check
      _
    $region3: #{tpu_custom_call.1} parent=1 // pred_check_branch
      %19 = sbr.rel (0) target = $region5
    $region4: #{tpu_custom_call.1} parent=1 // pred_region
      %s20 = sadd.s32 0, 0
      %p21 = scmp.lt.s32.totalorder %s20, 0
      %s22 = scalar_select %p21, %s20, 0
      %s24 = ssub.s32 128, 128
      %25 = vsyncadd [#allocation4], %s24
      %s26 = smul.addr %s22, 128
      %s27 = scalar_lea.hbm %s0, %s26
      %s29 = sshll.u32 [#allocation3], 4
      %s30 = int_to_ptr.vmem [resolvable:$true] %s29
      %32 = dma.hbm_to_vmem [thread:$0]  %s27, 128, %s30, [#allocation4]
    $region5: #{tpu_custom_call.1} parent=1 // pred_fallthru
      _
    // Predicated region
    $region6: #{tpu_custom_call.1} parent=1 // pred_check
      _
    $region7: #{tpu_custom_call.1} parent=1 // pred_check_branch
      %34 = sbr.rel (0) target = $region9
    $region8: #{tpu_custom_call.1} parent=1 // pred_region
      %s36 = ssub.s32 256, 256
      %37 = vsyncadd [#allocation7], %s36
      %s38 = sshll.u32 [#allocation6], 4
      %s39 = int_to_ptr.vmem [resolvable:$true] %s38
      %44 = dma.hbm_to_vmem [thread:$0]  %s1, 256, %s39, [#allocation7], 64, 64, 4
    $region9: #{tpu_custom_call.1} parent=1 // pred_fallthru
      _
    // Predicated region
    $region10: #{tpu_custom_call.1} parent=1 // pred_check
      _
    $region11: #{tpu_custom_call.1} parent=1 // pred_check_branch
      %46 = sbr.rel (0) target = $region13
    $region12: #{tpu_custom_call.1} parent=1 // pred_region
      _
    $region13: #{tpu_custom_call.1} parent=1 // pred_fallthru
      _
    // Predicated region
    $region14: #{tpu_custom_call.1} parent=1 // pred_check
      _
    $region15: #{tpu_custom_call.1} parent=1 // pred_check_branch
      %48 = sbr.rel (0) target = $region17
    $region16: #{tpu_custom_call.1} parent=1 // pred_region
      %s50 = ssub.s32 1024, 1024
      %51 = vsyncadd [#allocation7], %s50
      %s52 = sshll.u32 [#allocation8], 4
      %s53 = int_to_ptr.vmem [resolvable:$true] %s52
      %58 = dma.hbm_to_vmem [thread:$0]  %s3, 1024, %s53, [#allocation7], 64, 64, 4
    $region17: #{tpu_custom_call.1} parent=1 // pred_fallthru
      _
    // Predicated region
    $region18: #{tpu_custom_call.1} parent=1 // pred_check
      _
    $region19: #{tpu_custom_call.1} parent=1 // pred_check_branch
      %60 = sbr.rel (0) target = $region21
    $region20: #{tpu_custom_call.1} parent=1 // pred_region
      _
    $region21: #{tpu_custom_call.1} parent=1 // pred_fallthru
      _
    // Predicated region
    $region22: #{tpu_custom_call.1} parent=1 // pred_check
      _
    $region23: #{tpu_custom_call.1} parent=1 // pred_check_branch
      %62 = sbr.rel (0) target = $region25
    $region24: #{tpu_custom_call.1} parent=1 // pred_region
      %s64 = ssub.s32 1024, 1024
      %65 = vsyncadd [#allocation10], %s64
      %s66 = sshll.u32 [#allocation9], 4
      %s67 = int_to_ptr.vmem [resolvable:$true] %s66
      %72 = dma.hbm_to_vmem [thread:$0]  %s5, 1024, %s67, [#allocation10], 64, 64, 4
    $region25: #{tpu_custom_call.1} parent=1 // pred_fallthru
      _
    // Predicated region
    $region26: #{tpu_custom_call.1} parent=1 // pred_check
      _
    $region27: #{tpu_custom_call.1} parent=1 // pred_check_branch
      %74 = sbr.rel (0) target = $region29
    $region28: #{tpu_custom_call.1} parent=1 // pred_region
      _
    $region29: #{tpu_custom_call.1} parent=1 // pred_fallthru
      _
    // Predicated region
    $region30: #{tpu_custom_call.1} parent=1 // pred_check
      _
    $region31: #{tpu_custom_call.1} parent=1 // pred_check_branch
      %76 = sbr.rel (0) target = $region33
    $region32: #{tpu_custom_call.1} parent=1 // pred_region
      %s78 = ssub.s32 1024, 1024
      %79 = vsyncadd [#allocation10], %s78
      %s80 = sshll.u32 [#allocation11], 4
      %s81 = int_to_ptr.vmem [resolvable:$true] %s80
      %86 = dma.hbm_to_vmem [thread:$0]  %s7, 1024, %s81, [#allocation10], 64, 64, 4
    $region33: #{tpu_custom_call.1} parent=1 // pred_fallthru
      _
    // Predicated region
    $region34: #{tpu_custom_call.1} parent=1 // pred_check
      _
    $region35: #{tpu_custom_call.1} parent=1 // pred_check_branch
      %88 = sbr.rel (0) target = $region37
    $region36: #{tpu_custom_call.1} parent=1 // pred_region
      _
    $region37: #{tpu_custom_call.1} parent=1 // pred_fallthru
      _
    // Predicated region
    $region38: #{tpu_custom_call.1} parent=1 // pred_check
      _
    $region39: #{tpu_custom_call.1} parent=1 // pred_check_branch
      %90 = sbr.rel (0) target = $region41
    $region40: #{tpu_custom_call.1} parent=1 // pred_region
      %91 = dma.done [#allocation4], 128
    $region41: #{tpu_custom_call.1} parent=1 // pred_fallthru
      _
    // Predicated region
    $region42: #{tpu_custom_call.1} parent=1 // pred_check
      _
    $region43: #{tpu_custom_call.1} parent=1 // pred_check_branch
      %93 = sbr.rel (0) target = $region45
    $region44: #{tpu_custom_call.1} parent=1 // pred_region
      %94 = dma.done [#allocation7], 256
    $region45: #{tpu_custom_call.1} parent=1 // pred_fallthru
      _
    // Predicated region
    $region46: #{tpu_custom_call.1} parent=1 // pred_check
      _
    $region47: #{tpu_custom_call.1} parent=1 // pred_check_branch
      %96 = sbr.rel (0) target = $region49
    $region48: #{tpu_custom_call.1} parent=1 // pred_region
      %97 = dma.done [#allocation7], 1024
    $region49: #{tpu_custom_call.1} parent=1 // pred_fallthru
      _
    // Predicated region
    $region50: #{tpu_custom_call.1} parent=1 // pred_check
      _
    $region51: #{tpu_custom_call.1} parent=1 // pred_check_branch
      %99 = sbr.rel (0) target = $region53
    $region52: #{tpu_custom_call.1} parent=1 // pred_region
      %100 = dma.done [#allocation10], 1024
    $region53: #{tpu_custom_call.1} parent=1 // pred_fallthru
      _
    // Predicated region
    $region54: #{tpu_custom_call.1} parent=1 // pred_check
      _
    $region55: #{tpu_custom_call.1} parent=1 // pred_check_branch
      %102 = sbr.rel (0) target = $region57
    $region56: #{tpu_custom_call.1} parent=1 // pred_region
      %103 = dma.done [#allocation10], 1024
    $region57: #{tpu_custom_call.1} parent=1 // pred_fallthru
      _
    %s104 = sadd.s32 0, 0
    %p105 = scmp.lt.s32.totalorder %s104, 0
    %s106 = scalar_select %p105, %s104, 0
    %p108 = scmp.eq.s32.totalorder 0, 0
    // Predicated region
    $region58: #{tpu_custom_call.1} parent=1 // pred_check
      %p109 = pneg %p108
    $region59: #{tpu_custom_call.1} parent=1 // pred_check_branch
      %111 = sbr.rel (%p109) target = $region61
    $region60: #{tpu_custom_call.1} parent=1 // pred_region
      %112 = vst [vmem:[#allocation2] sm:$0x1] 0.0
    $region61: #{tpu_custom_call.1} parent=1 // pred_fallthru
      _
    %v113 = vld [vmem:[#allocation3] sm:$0xff]
    %v114 = vpack.c.bf16 %v113, %v113
    %v115 = vld [vmem:[#allocation6] sm:$0xf]
    %v116 = vld [vmem:[#allocation6 + $0x4] sm:$0xf]
    %v117 = vld [vmem:[#allocation6 + $0x8] sm:$0xf]
    %v118 = vld [vmem:[#allocation6 + $0xc] sm:$0xf]
    %v119 = vld [vmem:[%s2] sm:$0x1]
    %v121 = vlaneseq
    %v122 = vshrl.u32 %v121, 7
    %v123 = vsub.s32 0, %v122
    %v124 = vrot.slane %v119, %v123
    %v130 = vunpack.c.l.b16 %v115
    %v131 = vunpack.c.l.b16 %v116
    %v132 = vunpack.c.l.b16 %v117
    %v133 = vunpack.c.l.b16 %v118
    %v134 = vpack.c.b16 %v131, %v130
    %v135 = vpack.c.b16 %v133, %v132
    %vm138 = vcmask 261120
    %v140 = vsel %vm138, %v114, 0
    %142 = vmatprep.subr.bf16.mxu0 0
    %143 = vmatpush1.bf16.msra.mxu0 %v134
    %144 = vmatprep.subr.bf16.mxu0 0
    %145 = vmatpush1.bf16.msra.mxu0 %v135
    %146 = vmatprep.subr.bf16.mxu0 0
    %147 = vmatpush1.bf16.msra.mxu0 0
    %148 = vmatprep.subr.bf16.mxu0 0
    %149 = vmatpush1.bf16.msra.mxu0 0
    %150 = vmatprep.subr.bf16.mxu0 0
    %151 = vmatpush1.bf16.msra.mxu0 0
    %152 = vmatprep.subr.bf16.mxu0 0
    %153 = vmatpush1.bf16.msra.mxu0 0
    %154 = vmatprep.subr.bf16.mxu0 0
    %155 = vmatpush1.bf16.msra.mxu0 0
    %156 = vmatprep.subr.bf16.mxu0 0
    %157 = vmatpush1.bf16.msra.mxu0 0
    %158 = vmatprep.subr.bf16.mxu0 0
    %159 = vmatpush1.bf16.msra.mxu0 0
    %160 = vmatprep.subr.bf16.mxu0 0
    %161 = vmatpush1.bf16.msra.mxu0 0
    %162 = vmatprep.subr.bf16.mxu0 0
    %163 = vmatpush1.bf16.msra.mxu0 0
    %164 = vmatprep.subr.bf16.mxu0 0
    %165 = vmatpush1.bf16.msra.mxu0 0
    %166 = vmatprep.subr.bf16.mxu0 0
    %167 = vmatpush1.bf16.msra.mxu0 0
    %168 = vmatprep.subr.bf16.mxu0 0
    %169 = vmatpush1.bf16.msra.mxu0 0
    %170 = vmatprep.subr.bf16.mxu0 0
    %171 = vmatpush1.bf16.msra.mxu0 0
    %172 = vmatprep.subr.bf16.mxu0 0
    %173 = vmatpush1.bf16.msra.mxu0 0
    %174 = vmatprep.mubr.bf16.mxu0 0
    %175 = vmatmul.mubr.bf16.gmra.mrb[0].mxu0 %v140
    %v176 = vpop.f32.mrb[0].mxu0
    %v177 = vadd.f32 %v124, %v176
    %v178 = vpop.f32.mrb[0].mxu0
    %v179 = vpop.f32.mrb[0].mxu0
    %v180 = vpop.f32.mrb[0].mxu0
    %181 = vdwg.mxu0
    %v182 = vmax.f32 %v177, 0.0
    %v183 = vpack.c.bf16 %v182, %v182
    %v184 = vld [vmem:[#allocation8] sm:$0xf]
    %v185 = vld [vmem:[#allocation8 + $0x4] sm:$0xf]
    %v186 = vld [vmem:[#allocation8 + $0x8] sm:$0xf]
    %v187 = vld [vmem:[#allocation8 + $0xc] sm:$0xf]
    %v188 = vld [vmem:[#allocation8 + $0x10] sm:$0xf]
    %v189 = vld [vmem:[#allocation8 + $0x14] sm:$0xf]
    %v190 = vld [vmem:[#allocation8 + $0x18] sm:$0xf]
    %v191 = vld [vmem:[#allocation8 + $0x1c] sm:$0xf]
    %v192 = vld [vmem:[#allocation8 + $0x20] sm:$0xf]
    %v193 = vld [vmem:[#allocation8 + $0x24] sm:$0xf]
    %v194 = vld [vmem:[#allocation8 + $0x28] sm:$0xf]
    %v195 = vld [vmem:[#allocation8 + $0x2c] sm:$0xf]
    %v196 = vld [vmem:[#allocation8 + $0x30] sm:$0xf]
    %v197 = vld [vmem:[#allocation8 + $0x34] sm:$0xf]
    %v198 = vld [vmem:[#allocation8 + $0x38] sm:$0xf]
    %v199 = vld [vmem:[#allocation8 + $0x3c] sm:$0xf]
    %v200 = vld [vmem:[%s4] sm:$0x1]
    %v202 = vlaneseq
    %v203 = vshrl.u32 %v202, 7
    %v204 = vsub.s32 0, %v203
    %v205 = vrot.slane %v200, %v204
    %v223 = vunpack.c.l.b16 %v184
    %v224 = vunpack.c.l.b16 %v185
    %v225 = vunpack.c.l.b16 %v186
    %v226 = vunpack.c.l.b16 %v187
    %v227 = vunpack.c.l.b16 %v188
    %v228 = vunpack.c.l.b16 %v189
    %v229 = vunpack.c.l.b16 %v190
    %v230 = vunpack.c.l.b16 %v191
    %v231 = vunpack.c.l.b16 %v192
    %v232 = vunpack.c.l.b16 %v193
    %v233 = vunpack.c.l.b16 %v194
    %v234 = vunpack.c.l.b16 %v195
    %v235 = vunpack.c.l.b16 %v196
    %v236 = vunpack.c.l.b16 %v197
    %v237 = vunpack.c.l.b16 %v198
    %v238 = vunpack.c.l.b16 %v199
    %v239 = vpack.c.b16 %v224, %v223
    %v240 = vpack.c.b16 %v226, %v225
    %v241 = vpack.c.b16 %v228, %v227
    %v242 = vpack.c.b16 %v230, %v229
    %v243 = vpack.c.b16 %v232, %v231
    %v244 = vpack.c.b16 %v234, %v233
    %v245 = vpack.c.b16 %v236, %v235
    %v246 = vpack.c.b16 %v238, %v237
    %255 = vmatprep.subr.bf16.mxu0 0
    %256 = vmatpush1.bf16.msra.mxu0 %v239
    %257 = vmatprep.subr.bf16.mxu0 0
    %258 = vmatpush1.bf16.msra.mxu0 %v240
    %259 = vmatprep.subr.bf16.mxu0 0
    %260 = vmatpush1.bf16.msra.mxu0 %v241
    %261 = vmatprep.subr.bf16.mxu0 0
    %262 = vmatpush1.bf16.msra.mxu0 %v242
    %263 = vmatprep.subr.bf16.mxu0 0
    %264 = vmatpush1.bf16.msra.mxu0 %v243
    %265 = vmatprep.subr.bf16.mxu0 0
    %266 = vmatpush1.bf16.msra.mxu0 %v244
    %267 = vmatprep.subr.bf16.mxu0 0
    %268 = vmatpush1.bf16.msra.mxu0 %v245
    %269 = vmatprep.subr.bf16.mxu0 0
    %270 = vmatpush1.bf16.msra.mxu0 %v246
    %271 = vmatprep.subr.bf16.mxu0 0
    %272 = vmatpush1.bf16.msra.mxu0 0
    %273 = vmatprep.subr.bf16.mxu0 0
    %274 = vmatpush1.bf16.msra.mxu0 0
    %275 = vmatprep.subr.bf16.mxu0 0
    %276 = vmatpush1.bf16.msra.mxu0 0
    %277 = vmatprep.subr.bf16.mxu0 0
    %278 = vmatpush1.bf16.msra.mxu0 0
    %279 = vmatprep.subr.bf16.mxu0 0
    %280 = vmatpush1.bf16.msra.mxu0 0
    %281 = vmatprep.subr.bf16.mxu0 0
    %282 = vmatpush1.bf16.msra.mxu0 0
    %283 = vmatprep.subr.bf16.mxu0 0
    %284 = vmatpush1.bf16.msra.mxu0 0
    %285 = vmatprep.subr.bf16.mxu0 0
    %286 = vmatpush1.bf16.msra.mxu0 0
    %287 = vmatprep.mubr.bf16.mxu0 0
    %288 = vmatmul.mubr.bf16.gmra.mrb[0].mxu0 %v183
    %v289 = vpop.f32.mrb[0].mxu0
    %v290 = vadd.f32 %v205, %v289
    %v291 = vpop.f32.mrb[0].mxu0
    %v292 = vpop.f32.mrb[0].mxu0
    %v293 = vpop.f32.mrb[0].mxu0
    %294 = vdwg.mxu0
    %v295 = vmax.f32 %v290, 0.0
    %v296 = vpack.c.bf16 %v295, %v295
    %v297 = vld [vmem:[#allocation9] sm:$0xf]
    %v298 = vld [vmem:[#allocation9 + $0x4] sm:$0xf]
    %v299 = vld [vmem:[#allocation9 + $0x8] sm:$0xf]
    %v300 = vld [vmem:[#allocation9 + $0xc] sm:$0xf]
    %v301 = vld [vmem:[#allocation9 + $0x10] sm:$0xf]
    %v302 = vld [vmem:[#allocation9 + $0x14] sm:$0xf]
    %v303 = vld [vmem:[#allocation9 + $0x18] sm:$0xf]
    %v304 = vld [vmem:[#allocation9 + $0x1c] sm:$0xf]
    %v305 = vld [vmem:[#allocation9 + $0x20] sm:$0xf]
    %v306 = vld [vmem:[#allocation9 + $0x24] sm:$0xf]
    %v307 = vld [vmem:[#allocation9 + $0x28] sm:$0xf]
    %v308 = vld [vmem:[#allocation9 + $0x2c] sm:$0xf]
    %v309 = vld [vmem:[#allocation9 + $0x30] sm:$0xf]
    %v310 = vld [vmem:[#allocation9 + $0x34] sm:$0xf]
    %v311 = vld [vmem:[#allocation9 + $0x38] sm:$0xf]
    %v312 = vld [vmem:[#allocation9 + $0x3c] sm:$0xf]
    %v313 = vld [vmem:[%s6] sm:$0x1]
    %v315 = vlaneseq
    %v316 = vshrl.u32 %v315, 7
    %v317 = vsub.s32 0, %v316
    %v318 = vrot.slane %v313, %v317
    %v336 = vunpack.c.l.b16 %v297
    %v337 = vunpack.c.l.b16 %v298
    %v338 = vunpack.c.l.b16 %v299
    %v339 = vunpack.c.l.b16 %v300
    %v340 = vunpack.c.l.b16 %v301
    %v341 = vunpack.c.l.b16 %v302
    %v342 = vunpack.c.l.b16 %v303
    %v343 = vunpack.c.l.b16 %v304
    %v344 = vunpack.c.l.b16 %v305
    %v345 = vunpack.c.l.b16 %v306
    %v346 = vunpack.c.l.b16 %v307
    %v347 = vunpack.c.l.b16 %v308
    %v348 = vunpack.c.l.b16 %v309
    %v349 = vunpack.c.l.b16 %v310
    %v350 = vunpack.c.l.b16 %v311
    %v351 = vunpack.c.l.b16 %v312
    %v352 = vpack.c.b16 %v337, %v336
    %v353 = vpack.c.b16 %v339, %v338
    %v354 = vpack.c.b16 %v341, %v340
    %v355 = vpack.c.b16 %v343, %v342
    %v356 = vpack.c.b16 %v345, %v344
    %v357 = vpack.c.b16 %v347, %v346
    %v358 = vpack.c.b16 %v349, %v348
    %v359 = vpack.c.b16 %v351, %v350
    %368 = vmatprep.subr.bf16.mxu0 0
    %369 = vmatpush1.bf16.msra.mxu0 %v352
    %370 = vmatprep.subr.bf16.mxu0 0
    %371 = vmatpush1.bf16.msra.mxu0 %v353
    %372 = vmatprep.subr.bf16.mxu0 0
    %373 = vmatpush1.bf16.msra.mxu0 %v354
    %374 = vmatprep.subr.bf16.mxu0 0
    %375 = vmatpush1.bf16.msra.mxu0 %v355
    %376 = vmatprep.subr.bf16.mxu0 0
    %377 = vmatpush1.bf16.msra.mxu0 %v356
    %378 = vmatprep.subr.bf16.mxu0 0
    %379 = vmatpush1.bf16.msra.mxu0 %v357
    %380 = vmatprep.subr.bf16.mxu0 0
    %381 = vmatpush1.bf16.msra.mxu0 %v358
    %382 = vmatprep.subr.bf16.mxu0 0
    %383 = vmatpush1.bf16.msra.mxu0 %v359
    %384 = vmatprep.subr.bf16.mxu0 0
    %385 = vmatpush1.bf16.msra.mxu0 0
    %386 = vmatprep.subr.bf16.mxu0 0
    %387 = vmatpush1.bf16.msra.mxu0 0
    %388 = vmatprep.subr.bf16.mxu0 0
    %389 = vmatpush1.bf16.msra.mxu0 0
    %390 = vmatprep.subr.bf16.mxu0 0
    %391 = vmatpush1.bf16.msra.mxu0 0
    %392 = vmatprep.subr.bf16.mxu0 0
    %393 = vmatpush1.bf16.msra.mxu0 0
    %394 = vmatprep.subr.bf16.mxu0 0
    %395 = vmatpush1.bf16.msra.mxu0 0
    %396 = vmatprep.subr.bf16.mxu0 0
    %397 = vmatpush1.bf16.msra.mxu0 0
    %398 = vmatprep.subr.bf16.mxu0 0
    %399 = vmatpush1.bf16.msra.mxu0 0
    %400 = vmatprep.mubr.bf16.mxu0 0
    %401 = vmatmul.mubr.bf16.gmra.mrb[0].mxu0 %v296
    %v402 = vpop.f32.mrb[0].mxu0
    %v403 = vadd.f32 %v318, %v402
    %v404 = vpop.f32.mrb[0].mxu0
    %v405 = vpop.f32.mrb[0].mxu0
    %v406 = vpop.f32.mrb[0].mxu0
    %407 = vdwg.mxu0
    %v408 = vmax.f32 %v403, 0.0
    %v409 = vld [vmem:[#allocation2] sm:$0x1]
    %v410 = vrot.slane %v408, 4
    %v411 = vadd.f32 %v408, %v410
    %v412 = vrot.slane %v411, 2
    %v413 = vadd.f32 %v411, %v412
    %v414 = vrot.slane %v413, 1
    %v415 = vadd.f32 %v413, %v414
    %v416 = vadd.f32 %v409, %v415
    %417 = vst [vmem:[#allocation2] sm:$0x1] %v416
    // Predicated region
    $region62: #{tpu_custom_call.1} parent=1 // pred_check
      %p418 = pneg %p108
    $region63: #{tpu_custom_call.1} parent=1 // pred_check_branch
      %420 = sbr.rel (%p418) target = $region65
    $region64: #{tpu_custom_call.1} parent=1 // pred_region
      %v421 = vld [vmem:[#allocation2] sm:$0x1]
      %v422 = vmul.f32 %v421, 0.125
      %v423 = vld [vmem:[#allocation11] sm:$0xf]
      %v424 = vld [vmem:[#allocation11 + $0x4] sm:$0xf]
      %v425 = vld [vmem:[#allocation11 + $0x8] sm:$0xf]
      %v426 = vld [vmem:[#allocation11 + $0xc] sm:$0xf]
      %v427 = vld [vmem:[#allocation11 + $0x10] sm:$0xf]
      %v428 = vld [vmem:[#allocation11 + $0x14] sm:$0xf]
      %v429 = vld [vmem:[#allocation11 + $0x18] sm:$0xf]
      %v430 = vld [vmem:[#allocation11 + $0x1c] sm:$0xf]
      %v431 = vld [vmem:[#allocation11 + $0x20] sm:$0xf]
      %v432 = vld [vmem:[#allocation11 + $0x24] sm:$0xf]
      %v433 = vld [vmem:[#allocation11 + $0x28] sm:$0xf]
      %v434 = vld [vmem:[#allocation11 + $0x2c] sm:$0xf]
      %v435 = vld [vmem:[#allocation11 + $0x30] sm:$0xf]
      %v436 = vld [vmem:[#allocation11 + $0x34] sm:$0xf]
      %v437 = vld [vmem:[#allocation11 + $0x38] sm:$0xf]
      %v438 = vld [vmem:[#allocation11 + $0x3c] sm:$0xf]
      %v439 = vld [vmem:[%s8] sm:$0x1]
      %v440 = vpack.c.bf16 %v422, %v422
      %v457 = vunpack.c.l.b16 %v423
      %v458 = vunpack.c.l.b16 %v424
      %v459 = vunpack.c.l.b16 %v425
      %v460 = vunpack.c.l.b16 %v426
      %v461 = vunpack.c.l.b16 %v427
      %v462 = vunpack.c.l.b16 %v428
      %v463 = vunpack.c.l.b16 %v429
      %v464 = vunpack.c.l.b16 %v430
      %v465 = vunpack.c.l.b16 %v431
      %v466 = vunpack.c.l.b16 %v432
      %v467 = vunpack.c.l.b16 %v433
      %v468 = vunpack.c.l.b16 %v434
      %v469 = vunpack.c.l.b16 %v435
      %v470 = vunpack.c.l.b16 %v436
      %v471 = vunpack.c.l.b16 %v437
      %v472 = vunpack.c.l.b16 %v438
      %v473 = vpack.c.b16 %v458, %v457
      %v474 = vpack.c.b16 %v460, %v459
      %v475 = vpack.c.b16 %v462, %v461
      %v476 = vpack.c.b16 %v464, %v463
      %v477 = vpack.c.b16 %v466, %v465
      %v478 = vpack.c.b16 %v468, %v467
      %v479 = vpack.c.b16 %v470, %v469
      %v480 = vpack.c.b16 %v472, %v471
      %489 = vmatprep.subr.bf16.mxu0 0
      %490 = vmatpush1.bf16.msra.mxu0 %v473
      %491 = vmatprep.subr.bf16.mxu0 0
      %492 = vmatpush1.bf16.msra.mxu0 %v474
      %493 = vmatprep.subr.bf16.mxu0 0
      %494 = vmatpush1.bf16.msra.mxu0 %v475
      %495 = vmatprep.subr.bf16.mxu0 0
      %496 = vmatpush1.bf16.msra.mxu0 %v476
      %497 = vmatprep.subr.bf16.mxu0 0
      %498 = vmatpush1.bf16.msra.mxu0 %v477
      %499 = vmatprep.subr.bf16.mxu0 0
      %500 = vmatpush1.bf16.msra.mxu0 %v478
      %501 = vmatprep.subr.bf16.mxu0 0
      %502 = vmatpush1.bf16.msra.mxu0 %v479
      %503 = vmatprep.subr.bf16.mxu0 0
      %504 = vmatpush1.bf16.msra.mxu0 %v480
      %505 = vmatprep.subr.bf16.mxu0 0
      %506 = vmatpush1.bf16.msra.mxu0 0
      %507 = vmatprep.subr.bf16.mxu0 0
      %508 = vmatpush1.bf16.msra.mxu0 0
      %509 = vmatprep.subr.bf16.mxu0 0
      %510 = vmatpush1.bf16.msra.mxu0 0
      %511 = vmatprep.subr.bf16.mxu0 0
      %512 = vmatpush1.bf16.msra.mxu0 0
      %513 = vmatprep.subr.bf16.mxu0 0
      %514 = vmatpush1.bf16.msra.mxu0 0
      %515 = vmatprep.subr.bf16.mxu0 0
      %516 = vmatpush1.bf16.msra.mxu0 0
      %517 = vmatprep.subr.bf16.mxu0 0
      %518 = vmatpush1.bf16.msra.mxu0 0
      %519 = vmatprep.subr.bf16.mxu0 0
      %520 = vmatpush1.bf16.msra.mxu0 0
      %521 = vmatprep.mubr.bf16.mxu0 0
      %522 = vmatmul.mubr.bf16.gmra.mrb[0].mxu0 %v440
      %v523 = vpop.f32.mrb[0].mxu0
      %v524 = vadd.f32 %v439, %v523
      %v525 = vpop.f32.mrb[0].mxu0
      %v526 = vpop.f32.mrb[0].mxu0
      %v527 = vpop.f32.mrb[0].mxu0
      %528 = vdwg.mxu0
      %529 = vst [vmem:[#allocation12] sm:$0x1] %v524
    $region65: #{tpu_custom_call.1} parent=1 // pred_fallthru
      _
    // Predicated region
    $region66: #{tpu_custom_call.1} parent=1 // pred_check
      _
    $region67: #{tpu_custom_call.1} parent=1 // pred_check_branch
      %531 = sbr.rel (0) target = $region69
    $region68: #{tpu_custom_call.1} parent=1 // pred_region
      %s533 = ssub.s32 16, 16
      %534 = vsyncadd [#allocation5], %s533
      %s536 = sshll.u32 [#allocation12], 4
      %s537 = int_to_ptr.vmem [resolvable:$true] %s536
      %539 = dma.vmem_to_hbm [thread:$0]  %s537, 16, %s9, [#allocation5]
    $region69: #{tpu_custom_call.1} parent=1 // pred_fallthru
      _
    // Predicated region
    $region70: #{tpu_custom_call.1} parent=1 // pred_check
      _
    $region71: #{tpu_custom_call.1} parent=1 // pred_check_branch
      %541 = sbr.rel (0) target = $region73
    $region72: #{tpu_custom_call.1} parent=1 // pred_region
      %542 = dma.done [#allocation5], 16
    $region73: #{tpu_custom_call.1} parent=1 // pred_fallthru
      _
    %543 = vsyncpa [#allocation4], 1
    %544 = vsyncpa [#allocation7], 1
    %545 = vsyncpa [#allocation10], 1
    %546 = vsyncpa [#allocation5], 1

</llo_original>
